<compile_context>
chip_gen: v6e
topology: v6e:2x2x1
jax: 0.10.0
libtpu: 0.0.40
codegen_flags: <defaults>
</compile_context>

<pallas_src>
import functools
import math

import jax
import jax.numpy as jnp
from jax.experimental import pallas as pl
from jax.experimental.pallas import tpu as pltpu

_COS_5_DEG = math.cos(math.radians(5.0))


def _round_up(x, m):
    return (x + m - 1) // m * m


def _ce_kernel(M, TD, D, RC, wp_ref, lab_ref, lg_ref, ce_ref):
    """Processes one batch block, streaming it in RC-row chunks.

    wp_ref : (TB, M*TD)  waypoint_pred, batch-major (rows = batch).
    lab_ref: (TB, TD)    label_waypoint.
    lg_ref : (TB, M)     mode logits.
    ce_ref : (TB, 1)     per-row cross-entropy.
    """
    nchunks = wp_ref.shape[0] // RC          # static (wrapper guarantees TB % RC == 0)

    def chunk(c, carry):
        r0 = pl.multiple_of(c * RC, RC)
        rows = pl.ds(r0, RC)

        wp = wp_ref[rows, :]                 # (RC, M*TD)
        lab = lab_ref[rows, :]               # (RC, TD)
        lg = lg_ref[rows, :]                 # (RC, M)

        lab_end = lab[:, TD - D:]            # (RC, D)
        l_sq = jnp.sum(lab_end * lab_end, axis=1, keepdims=True)      # (RC, 1)

        # --- per-mode SSE + endpoint dot / |pred_end|^2 (exact f32) ----------
        sse_cols, dot_cols, psq_cols = [], [], []
        for m in range(M):                   # M is small; unrolled, temps stay RC-sized
            wpm = wp[:, m * TD:(m + 1) * TD]                           # (RC, TD)
            df = wpm - lab
            sse_cols.append(jnp.sum(df * df, axis=1, keepdims=True))  # (RC, 1)
            pe = wpm[:, TD - D:]                                       # (RC, D)
            dot_cols.append(jnp.sum(pe * lab_end, axis=1, keepdims=True))
            psq_cols.append(jnp.sum(pe * pe, axis=1, keepdims=True))
        sse = jnp.concatenate(sse_cols, axis=1)                        # (RC, M)
        dot_e = jnp.concatenate(dot_cols, axis=1)                      # (RC, M)
        p_sq = jnp.concatenate(psq_cols, axis=1)                       # (RC, M)

        # --- endpoint-angle candidate test ------------------------------------
        # acos(cos_sim) < 5deg  <=>  cos_sim in (cos 5deg, 1]; NaN / >1 -> False,
        # matching torch (acos is monotone, out-of-domain -> NaN -> False).
        cos_sim = dot_e * jax.lax.rsqrt(p_sq * l_sq)                   # EUP rsqrt
        cand = jnp.logical_and(cos_sim > _COS_5_DEG, cos_sim <= 1.0)
        any_cand = jnp.max(cand.astype(jnp.int32), axis=1, keepdims=True)
        cand = jnp.logical_or(cand, any_cand == 0)

        # Non-candidates -> +inf via select (reference multiplies by inf, which
        # yields NaN when sse == 0; select keeps the intended semantics).
        sse = jnp.where(cand, sse, jnp.float32(jnp.inf))

        # --- first-argmin over modes -> one-hot --------------------------------
        min_val = jnp.min(sse, axis=1, keepdims=True)
        idx = jax.lax.broadcasted_iota(jnp.int32, sse.shape, 1)
        first = jnp.min(jnp.where(sse == min_val, idx, M), axis=1, keepdims=True)
        one_hot = idx == first

        # --- CE = -log(softmax(lg)[argmin] + 1e-8) ------------------------------
        mx = jnp.max(lg, axis=1, keepdims=True)
        ex = jnp.exp(lg - mx)
        sum_ex = jnp.sum(ex, axis=1, keepdims=True)
        p_sel = jnp.sum(jnp.where(one_hot, ex, 0.0), axis=1, keepdims=True) / sum_ex
        ce_ref[rows, :] = -jnp.log(p_sel + 1e-8)
        return carry

    jax.lax.fori_loop(0, nchunks, chunk, 0)


def ce_loss(waypoint_pred, p, label_waypoint, *, batch_tile=8192, row_chunk=256):
    """Pallas implementation of CELoss.forward((waypoint_pred, p), batch)."""
    B, M, T, D = waypoint_pred.shape
    TD = T * D
    F = M * TD

    # Batch-major views: contiguous reshapes only -- no transposes, no copies.
    wp = waypoint_pred.reshape(B, F).astype(jnp.float32)
    lab = label_waypoint.reshape(B, TD).astype(jnp.float32)
    lg = p.astype(jnp.float32)

    # ---- batch tiling ---------------------------------------------------------
    # batch_tile rounded to a multiple of 128 and capped at 16384 (v5e VMEM).
    batch_tile = _round_up(min(max(int(batch_tile), 128), 16384), 128)
    if B < 256:
        # Tiny batch: one full-array block (block == array dims is always legal).
        tb = B
        num_tiles = 1
    else:
        # >=2 grid steps so the "parallel" axis splits across both v7x cores;
        # per-step tile capped by batch_tile for the HBM/VMEM roofline.
        tb = min(batch_tile, _round_up(pl.cdiv(B, 2), 128))
        num_tiles = pl.cdiv(B, tb)       # ragged last block handled by Pallas

    # In-kernel row chunk: bounds live vregs without shrinking the DMA tile.
    if tb % row_chunk == 0:
        rc = row_chunk
    elif tb % 128 == 0:
        rc = 128
    else:
        rc = tb

    kernel = functools.partial(_ce_kernel, M, TD, D, rc)

    bytes_per_row = 4 * (F + TD + M + 1)
    cost = pl.CostEstimate(
        flops=B * (3 * F + 6 * M * D + 20 * M + 16),
        transcendentals=B * (2 * M + 1),
        bytes_accessed=B * bytes_per_row,
    )

    ce = pl.pallas_call(
        kernel,
        out_shape=jax.ShapeDtypeStruct((B, 1), jnp.float32),
        grid=(num_tiles,),
        in_specs=[
            pl.BlockSpec((tb, F), lambda i: (i, 0)),
            pl.BlockSpec((tb, TD), lambda i: (i, 0)),
            pl.BlockSpec((tb, M), lambda i: (i, 0)),
        ],
        out_specs=pl.BlockSpec((tb, 1), lambda i: (i, 0)),
        compiler_params=pltpu.CompilerParams(
            dimension_semantics=("parallel",),
            vmem_limit_bytes=32 * 1024 * 1024,
        ),
        cost_estimate=cost,
    )(wp, lab, lg)

    return jnp.sum(ce)


def ce_loss_reference(waypoint_pred, p, label_waypoint, modes):
    """Pure-JAX mirror of the PyTorch forward (sanity check)."""
    prob = jax.nn.softmax(p, axis=1)
    label = label_waypoint[:, None]                                 # (B, 1, T, D)
    pred_end = waypoint_pred[:, :, -1]                              # (B, M, D)
    lab_end = label[:, :, -1]                                       # (B, 1, D)
    pe = pred_end / jnp.linalg.norm(pred_end, axis=2, keepdims=True)
    le = lab_end / jnp.linalg.norm(lab_end, axis=2, keepdims=True)
    cos_sim = jnp.sum(pe * le, axis=2)
    deg = jnp.arccos(cos_sim) * (180.0 / jnp.pi)
    cand = deg < 5
    no_cand = jnp.sum(cand, axis=1) == 0
    cand = cand | no_cand[:, None]
    factor = jnp.where(cand, 1.0, jnp.inf)
    sse = jnp.sum((waypoint_pred - label) ** 2, axis=(2, 3)) * factor
    min_index = jnp.argmin(sse, axis=1)
    one_hot = jax.nn.one_hot(min_index, modes, dtype=jnp.float32)
    ce = jnp.sum(-one_hot * jnp.log(prob + 1e-8), axis=1)
    return ce.sum()


if __name__ == "__main__":
    # --- small shape consistent with the module: B=2, M=4 modes, T=8, D=2 ------
    B, M, T, D = 2, 4, 8, 2
    key = jax.random.PRNGKey(0)
    k1, k2, k3 = jax.random.split(key, 3)
    waypoint_pred = jax.random.normal(k1, (B, M, T, D), dtype=jnp.float32)
    p = jax.random.normal(k2, (B, M), dtype=jnp.float32)
    label_waypoint = jax.random.normal(k3, (B, T, D), dtype=jnp.float32)

    loss = ce_loss(waypoint_pred, p, label_waypoint)
    jax.block_until_ready(loss)
    ref = ce_loss_reference(waypoint_pred, p, label_waypoint, M)
    assert jnp.allclose(loss, ref, rtol=1e-5, atol=1e-5), (loss, ref)

    # --- tiled path: 2 grid steps x 2 in-kernel row chunks, no padding/copies --
    B2 = 1024
    k4, k5, k6 = jax.random.split(jax.random.PRNGKey(1), 3)
    wp2 = jax.random.normal(k4, (B2, M, T, D), dtype=jnp.float32)
    p2 = jax.random.normal(k5, (B2, M), dtype=jnp.float32)
    lab2 = jax.random.normal(k6, (B2, T, D), dtype=jnp.float32)
    loss2 = ce_loss(wp2, p2, lab2)
    jax.block_until_ready(loss2)
    ref2 = ce_loss_reference(wp2, p2, lab2, M)
    assert jnp.allclose(loss2, ref2, rtol=1e-4, atol=1e-3), (loss2, ref2)

    # --- ragged last block (B not a multiple of the tile) + 2 grid steps --------
    B3 = 300
    k7, k8, k9 = jax.random.split(jax.random.PRNGKey(2), 3)
    wp3 = jax.random.normal(k7, (B3, M, T, D), dtype=jnp.float32)
    p3 = jax.random.normal(k8, (B3, M), dtype=jnp.float32)
    lab3 = jax.random.normal(k9, (B3, T, D), dtype=jnp.float32)
    loss3 = ce_loss(wp3, p3, lab3)
    jax.block_until_ready(loss3)
    ref3 = ce_loss_reference(wp3, p3, lab3, M)
    assert jnp.allclose(loss3, ref3, rtol=1e-4, atol=1e-3), (loss3, ref3)

    print("KERNEL_OK")
</pallas_src>

<mosaic_0001>
module attributes {stable_mosaic.version = 11 : i64} {
  func.func @_ce_kernel(%arg0: i32, %arg1: memref<2x64xf32, #tpu.memory_space<vmem>>, %arg2: memref<2x16xf32, #tpu.memory_space<vmem>>, %arg3: memref<2x4xf32, #tpu.memory_space<vmem>>, %arg4: memref<2x1xf32, #tpu.memory_space<vmem>>) attributes {dimension_semantics = [#tpu.dimension_semantics<parallel>], iteration_bounds = array<i64: 1>, scalar_prefetch = 0 : i64, scratch_operands = 0 : i64, tpu.core_type = #tpu.core_type<tc>, window_params = [{transform_indices = @transform_0, window_bounds = array<i64: 2, 64>}, {transform_indices = @transform_1, window_bounds = array<i64: 2, 16>}, {transform_indices = @transform_2, window_bounds = array<i64: 2, 4>}, {transform_indices = @transform_3, window_bounds = array<i64: 2, 1>}]} {
    %c0_i32 = arith.constant 0 : i32
    %c2_i32 = arith.constant 2 : i32
    %0 = arith.muli %c0_i32, %c2_i32 : i32
    %1 = tpu.assume_multiple %0, 2 : i32
    %2 = arith.index_cast %1 : i32 to index
    %c0 = arith.constant 0 : index
    %3 = vector.load %arg1[%2, %c0] : memref<2x64xf32, #tpu.memory_space<vmem>>, vector<2x64xf32>
    %4 = arith.index_cast %1 : i32 to index
    %c0_0 = arith.constant 0 : index
    %5 = vector.load %arg2[%4, %c0_0] : memref<2x16xf32, #tpu.memory_space<vmem>>, vector<2x16xf32>
    %6 = arith.index_cast %1 : i32 to index
    %c0_1 = arith.constant 0 : index
    %7 = vector.load %arg3[%6, %c0_1] : memref<2x4xf32, #tpu.memory_space<vmem>>, vector<2x4xf32>
    %8 = vector.extract_strided_slice %5 {offsets = [0, 14], sizes = [2, 2], strides = [1, 1]} : vector<2x16xf32> to vector<2x2xf32>
    %9 = arith.mulf %8, %8 : vector<2x2xf32>
    %cst = arith.constant dense<0.000000e+00> : vector<2xf32>
    %10 = vector.multi_reduction <add>, %9, %cst [1] : vector<2x2xf32> to vector<2xf32>
    %11 = vector.shape_cast %10 : vector<2xf32> to vector<2x1xf32>
    %12 = vector.extract_strided_slice %3 {offsets = [0, 0], sizes = [2, 16], strides = [1, 1]} : vector<2x64xf32> to vector<2x16xf32>
    %13 = arith.subf %12, %5 : vector<2x16xf32>
    %14 = arith.mulf %13, %13 : vector<2x16xf32>
    %cst_2 = arith.constant dense<0.000000e+00> : vector<2xf32>
    %15 = vector.multi_reduction <add>, %14, %cst_2 [1] : vector<2x16xf32> to vector<2xf32>
    %16 = vector.shape_cast %15 : vector<2xf32> to vector<2x1xf32>
    %17 = vector.extract_strided_slice %12 {offsets = [0, 14], sizes = [2, 2], strides = [1, 1]} : vector<2x16xf32> to vector<2x2xf32>
    %18 = arith.mulf %17, %8 : vector<2x2xf32>
    %cst_3 = arith.constant dense<0.000000e+00> : vector<2xf32>
    %19 = vector.multi_reduction <add>, %18, %cst_3 [1] : vector<2x2xf32> to vector<2xf32>
    %20 = vector.shape_cast %19 : vector<2xf32> to vector<2x1xf32>
    %21 = arith.mulf %17, %17 : vector<2x2xf32>
    %cst_4 = arith.constant dense<0.000000e+00> : vector<2xf32>
    %22 = vector.multi_reduction <add>, %21, %cst_4 [1] : vector<2x2xf32> to vector<2xf32>
    %23 = vector.shape_cast %22 : vector<2xf32> to vector<2x1xf32>
    %24 = vector.extract_strided_slice %3 {offsets = [0, 16], sizes = [2, 16], strides = [1, 1]} : vector<2x64xf32> to vector<2x16xf32>
    %25 = arith.subf %24, %5 : vector<2x16xf32>
    %26 = arith.mulf %25, %25 : vector<2x16xf32>
    %cst_5 = arith.constant dense<0.000000e+00> : vector<2xf32>
    %27 = vector.multi_reduction <add>, %26, %cst_5 [1] : vector<2x16xf32> to vector<2xf32>
    %28 = vector.shape_cast %27 : vector<2xf32> to vector<2x1xf32>
    %29 = vector.extract_strided_slice %24 {offsets = [0, 14], sizes = [2, 2], strides = [1, 1]} : vector<2x16xf32> to vector<2x2xf32>
    %30 = arith.mulf %29, %8 : vector<2x2xf32>
    %cst_6 = arith.constant dense<0.000000e+00> : vector<2xf32>
    %31 = vector.multi_reduction <add>, %30, %cst_6 [1] : vector<2x2xf32> to vector<2xf32>
    %32 = vector.shape_cast %31 : vector<2xf32> to vector<2x1xf32>
    %33 = arith.mulf %29, %29 : vector<2x2xf32>
    %cst_7 = arith.constant dense<0.000000e+00> : vector<2xf32>
    %34 = vector.multi_reduction <add>, %33, %cst_7 [1] : vector<2x2xf32> to vector<2xf32>
    %35 = vector.shape_cast %34 : vector<2xf32> to vector<2x1xf32>
    %36 = vector.extract_strided_slice %3 {offsets = [0, 32], sizes = [2, 16], strides = [1, 1]} : vector<2x64xf32> to vector<2x16xf32>
    %37 = arith.subf %36, %5 : vector<2x16xf32>
    %38 = arith.mulf %37, %37 : vector<2x16xf32>
    %cst_8 = arith.constant dense<0.000000e+00> : vector<2xf32>
    %39 = vector.multi_reduction <add>, %38, %cst_8 [1] : vector<2x16xf32> to vector<2xf32>
    %40 = vector.shape_cast %39 : vector<2xf32> to vector<2x1xf32>
    %41 = vector.extract_strided_slice %36 {offsets = [0, 14], sizes = [2, 2], strides = [1, 1]} : vector<2x16xf32> to vector<2x2xf32>
    %42 = arith.mulf %41, %8 : vector<2x2xf32>
    %cst_9 = arith.constant dense<0.000000e+00> : vector<2xf32>
    %43 = vector.multi_reduction <add>, %42, %cst_9 [1] : vector<2x2xf32> to vector<2xf32>
    %44 = vector.shape_cast %43 : vector<2xf32> to vector<2x1xf32>
    %45 = arith.mulf %41, %41 : vector<2x2xf32>
    %cst_10 = arith.constant dense<0.000000e+00> : vector<2xf32>
    %46 = vector.multi_reduction <add>, %45, %cst_10 [1] : vector<2x2xf32> to vector<2xf32>
    %47 = vector.shape_cast %46 : vector<2xf32> to vector<2x1xf32>
    %48 = vector.extract_strided_slice %3 {offsets = [0, 48], sizes = [2, 16], strides = [1, 1]} : vector<2x64xf32> to vector<2x16xf32>
    %49 = arith.subf %48, %5 : vector<2x16xf32>
    %50 = arith.mulf %49, %49 : vector<2x16xf32>
    %cst_11 = arith.constant dense<0.000000e+00> : vector<2xf32>
    %51 = vector.multi_reduction <add>, %50, %cst_11 [1] : vector<2x16xf32> to vector<2xf32>
    %52 = vector.shape_cast %51 : vector<2xf32> to vector<2x1xf32>
    %53 = vector.extract_strided_slice %48 {offsets = [0, 14], sizes = [2, 2], strides = [1, 1]} : vector<2x16xf32> to vector<2x2xf32>
    %54 = arith.mulf %53, %8 : vector<2x2xf32>
    %cst_12 = arith.constant dense<0.000000e+00> : vector<2xf32>
    %55 = vector.multi_reduction <add>, %54, %cst_12 [1] : vector<2x2xf32> to vector<2xf32>
    %56 = vector.shape_cast %55 : vector<2xf32> to vector<2x1xf32>
    %57 = arith.mulf %53, %53 : vector<2x2xf32>
    %cst_13 = arith.constant dense<0.000000e+00> : vector<2xf32>
    %58 = vector.multi_reduction <add>, %57, %cst_13 [1] : vector<2x2xf32> to vector<2xf32>
    %59 = vector.shape_cast %58 : vector<2xf32> to vector<2x1xf32>
    %60 = tpu.concatenate %16, %28, %40, %52 in 1 : vector<2x1xf32>, vector<2x1xf32>, vector<2x1xf32>, vector<2x1xf32> -> vector<2x4xf32>
    %61 = tpu.concatenate %20, %32, %44, %56 in 1 : vector<2x1xf32>, vector<2x1xf32>, vector<2x1xf32>, vector<2x1xf32> -> vector<2x4xf32>
    %62 = tpu.concatenate %23, %35, %47, %59 in 1 : vector<2x1xf32>, vector<2x1xf32>, vector<2x1xf32>, vector<2x1xf32> -> vector<2x4xf32>
    %63 = vector.broadcast %11 : vector<2x1xf32> to vector<2x4xf32>
    %64 = arith.mulf %62, %63 : vector<2x4xf32>
    %65 = math.rsqrt %64 : vector<2x4xf32>
    %66 = arith.mulf %61, %65 : vector<2x4xf32>
    %cst_14 = arith.constant 0.99619472 : f32
    %67 = vector.broadcast %cst_14 : f32 to vector<2x4xf32>
    %68 = arith.cmpf ogt, %66, %67 : vector<2x4xf32>
    %cst_15 = arith.constant 1.000000e+00 : f32
    %69 = vector.broadcast %cst_15 : f32 to vector<2x4xf32>
    %70 = arith.cmpf ole, %66, %69 : vector<2x4xf32>
    %71 = arith.andi %68, %70 : vector<2x4xi1>
    %72 = arith.extui %71 : vector<2x4xi1> to vector<2x4xi32>
    %cst_16 = arith.constant dense<-2147483648> : vector<2xi32>
    %73 = vector.multi_reduction <maxsi>, %72, %cst_16 [1] : vector<2x4xi32> to vector<2xi32>
    %74 = vector.shape_cast %73 : vector<2xi32> to vector<2x1xi32>
    %c0_i32_17 = arith.constant 0 : i32
    %75 = vector.broadcast %c0_i32_17 : i32 to vector<2x1xi32>
    %76 = arith.cmpi eq, %74, %75 : vector<2x1xi32>
    %77 = vector.broadcast %76 : vector<2x1xi1> to vector<2x4xi1>
    %78 = arith.ori %71, %77 : vector<2x4xi1>
    %cst_18 = arith.constant 0x7F800000 : f32
    %79 = vector.broadcast %cst_18 : f32 to vector<2x4xf32>
    %80 = arith.select %78, %60, %79 : vector<2x4xi1>, vector<2x4xf32>
    %cst_19 = arith.constant dense<0x7F800000> : vector<2xf32>
    %81 = vector.multi_reduction <minimumf>, %80, %cst_19 [1] : vector<2x4xf32> to vector<2xf32>
    %82 = vector.shape_cast %81 : vector<2xf32> to vector<2x1xf32>
    %83 = tpu.iota {dimensions = array<i32: 1>} : vector<2x4xi32>
    %84 = vector.broadcast %82 : vector<2x1xf32> to vector<2x4xf32>
    %85 = arith.cmpf oeq, %80, %84 : vector<2x4xf32>
    %c4_i32 = arith.constant 4 : i32
    %86 = vector.broadcast %c4_i32 : i32 to vector<2x4xi32>
    %87 = arith.select %85, %83, %86 : vector<2x4xi1>, vector<2x4xi32>
    %cst_20 = arith.constant dense<2147483647> : vector<2xi32>
    %88 = vector.multi_reduction <minsi>, %87, %cst_20 [1] : vector<2x4xi32> to vector<2xi32>
    %89 = vector.shape_cast %88 : vector<2xi32> to vector<2x1xi32>
    %90 = vector.broadcast %89 : vector<2x1xi32> to vector<2x4xi32>
    %91 = arith.cmpi eq, %83, %90 : vector<2x4xi32>
    %cst_21 = arith.constant dense<0xFF800000> : vector<2xf32>
    %92 = vector.multi_reduction <maximumf>, %7, %cst_21 [1] : vector<2x4xf32> to vector<2xf32>
    %93 = vector.shape_cast %92 : vector<2xf32> to vector<2x1xf32>
    %94 = vector.broadcast %93 : vector<2x1xf32> to vector<2x4xf32>
    %95 = arith.subf %7, %94 : vector<2x4xf32>
    %96 = math.exp %95 : vector<2x4xf32>
    %cst_22 = arith.constant dense<0.000000e+00> : vector<2xf32>
    %97 = vector.multi_reduction <add>, %96, %cst_22 [1] : vector<2x4xf32> to vector<2xf32>
    %98 = vector.shape_cast %97 : vector<2xf32> to vector<2x1xf32>
    %cst_23 = arith.constant 0.000000e+00 : f32
    %99 = vector.broadcast %cst_23 : f32 to vector<2x4xf32>
    %100 = arith.select %91, %96, %99 : vector<2x4xi1>, vector<2x4xf32>
    %cst_24 = arith.constant dense<0.000000e+00> : vector<2xf32>
    %101 = vector.multi_reduction <add>, %100, %cst_24 [1] : vector<2x4xf32> to vector<2xf32>
    %102 = vector.shape_cast %101 : vector<2xf32> to vector<2x1xf32>
    %103 = arith.divf %102, %98 : vector<2x1xf32>
    %cst_25 = arith.constant 9.99999993E-9 : f32
    %104 = vector.broadcast %cst_25 : f32 to vector<2x1xf32>
    %105 = arith.addf %103, %104 : vector<2x1xf32>
    %106 = math.log %105 : vector<2x1xf32>
    %cst_26 = arith.constant 0.000000e+00 : f32
    %107 = vector.broadcast %cst_26 : f32 to vector<2x1xf32>
    %108 = arith.subf %107, %106 : vector<2x1xf32>
    %109 = arith.index_cast %1 : i32 to index
    %c0_27 = arith.constant 0 : index
    %110 = vector.load %arg4[%109, %c0_27] : memref<2x1xf32, #tpu.memory_space<vmem>>, vector<2x1xf32>
    tpu.vector_store %arg4[%109, %c0_27], %108 {strides = array<i32>} : memref<2x1xf32, #tpu.memory_space<vmem>>, vector<2x1xf32>,
    %c1_i32 = arith.constant 1 : i32
    return
  }
  func.func @transform_0(%arg0: i32) -> (i32, i32) {
    %c0_i32 = arith.constant 0 : i32
    %c0_i32_0 = arith.constant 0 : i32
    return %arg0, %c0_i32 : i32, i32
  }
  func.func @transform_1(%arg0: i32) -> (i32, i32) {
    %c0_i32 = arith.constant 0 : i32
    %c0_i32_0 = arith.constant 0 : i32
    return %arg0, %c0_i32 : i32, i32
  }
  func.func @transform_2(%arg0: i32) -> (i32, i32) {
    %c0_i32 = arith.constant 0 : i32
    %c0_i32_0 = arith.constant 0 : i32
    return %arg0, %c0_i32 : i32, i32
  }
  func.func @transform_3(%arg0: i32) -> (i32, i32) {
    %c0_i32 = arith.constant 0 : i32
    %c0_i32_0 = arith.constant 0 : i32
    return %arg0, %c0_i32 : i32, i32
  }
}

</mosaic_0001>

<llo_original>
// kernel: tpu_custom_call.1
$region0: #{tpu_custom_call.1}
  #allocation0 [shape = 'u32[]', space=smem, size = 0x4, offset = 0x4, fixed_abs, tag = 'smem constant byte address 0x4 - core index']
  #allocation1 [shape = 'u32[144,128]{1,0:T(1,128)}', space=vmem, size = 0x12000, scoped, tag = 'internal scratch']
  %s0 = inlined_call_operand.hbm [shape: f32[2,64], index: 0, kind: input, shape index: {}]
  %s1 = inlined_call_operand.hbm [shape: f32[2,16], index: 1, kind: input, shape index: {}]
  %s2 = inlined_call_operand.vmem [shape: f32[2,4], index: 2, kind: input, shape index: {}]
  %s3 = inlined_call_operand.vmem [shape: f32[2,1], index: 3, kind: output, shape index: {}]
  %s4 = sld [smem:[#allocation0]]
  $region30: #{tpu_custom_call.1} parent=0
    _
  %s6 = ssub.s32 1, %s4
  %s7 = scalar_select 0, %s6, %s4
  $region1: #{tpu_custom_call.1} parent=0
    #allocation2 [shape = 'u8[1024]{0}', space=vmem, size = 0x400, scoped, tag = 'input window, operand 0, single buffered']
    #allocation3 [shape = 's32[1]{0}', space=sflag, size = 0x4, scoped, tag = 'scoped memory for tpu_custom_call.1']
    #allocation4 [shape = 'u8[1024]{0}', space=vmem, size = 0x400, scoped, tag = 'input window, operand 1, single buffered']
    #allocation5 [shape = 's32[1]{0}', space=sflag, size = 0x4, scoped, tag = 'scoped memory for tpu_custom_call.1']
    %8 = vsyncpa [#allocation3], 0
    %9 = vsyncpa [#allocation5], 0
    // Predicated region
    $region2: #{tpu_custom_call.1} parent=1 // pred_check
      _
    $region3: #{tpu_custom_call.1} parent=1 // pred_check_branch
      %11 = sbr.rel (0) target = $region5
    $region4: #{tpu_custom_call.1} parent=1 // pred_region
      %s13 = ssub.s32 32, 32
      %14 = vsyncadd [#allocation3], %s13
      %s16 = sshll.u32 [#allocation2], 4
      %s17 = int_to_ptr.vmem [resolvable:$true] %s16
      %19 = dma.hbm_to_vmem [thread:$0]  %s0, 32, %s17, [#allocation3]
    $region5: #{tpu_custom_call.1} parent=1 // pred_fallthru
      _
    // Predicated region
    $region6: #{tpu_custom_call.1} parent=1 // pred_check
      _
    $region7: #{tpu_custom_call.1} parent=1 // pred_check_branch
      %21 = sbr.rel (0) target = $region9
    $region8: #{tpu_custom_call.1} parent=1 // pred_region
      %s23 = ssub.s32 32, 32
      %24 = vsyncadd [#allocation5], %s23
      %s26 = sshll.u32 [#allocation4], 4
      %s27 = int_to_ptr.vmem [resolvable:$true] %s26
      %29 = dma.hbm_to_vmem [thread:$0]  %s1, 32, %s27, [#allocation5]
    $region9: #{tpu_custom_call.1} parent=1 // pred_fallthru
      _
    // Predicated region
    $region10: #{tpu_custom_call.1} parent=1 // pred_check
      _
    $region11: #{tpu_custom_call.1} parent=1 // pred_check_branch
      %31 = sbr.rel (0) target = $region13
    $region12: #{tpu_custom_call.1} parent=1 // pred_region
      _
    $region13: #{tpu_custom_call.1} parent=1 // pred_fallthru
      _
    // Predicated region
    $region14: #{tpu_custom_call.1} parent=1 // pred_check
      _
    $region15: #{tpu_custom_call.1} parent=1 // pred_check_branch
      %33 = sbr.rel (0) target = $region17
    $region16: #{tpu_custom_call.1} parent=1 // pred_region
      %34 = dma.done [#allocation3], 32
    $region17: #{tpu_custom_call.1} parent=1 // pred_fallthru
      _
    // Predicated region
    $region18: #{tpu_custom_call.1} parent=1 // pred_check
      _
    $region19: #{tpu_custom_call.1} parent=1 // pred_check_branch
      %36 = sbr.rel (0) target = $region21
    $region20: #{tpu_custom_call.1} parent=1 // pred_region
      %37 = dma.done [#allocation5], 32
    $region21: #{tpu_custom_call.1} parent=1 // pred_fallthru
      _
    %v38 = vld [vmem:[#allocation2] sm:$0x3]
    %v39 = vld [vmem:[#allocation4] sm:$0x3]
    %v40 = vld [vmem:[%s2] sm:$0x3]
    %v41 = vmul.f32 %v39, %v39
    %43 = vrot.lane.b32.xlu0 %v41, 114
    %v44 = vpop.permute.xlu0 %43
    %vm46 = vcmask 9216
    %v47 = vsel %vm46, %v44, 0.0
    %48 = vadd.xlane.f32.xlu0 %v47
    %v49 = vpop.xlane.xlu0 %48
    %v50 = vsub.f32 %v38, %v39
    %v51 = vmul.f32 %v50, %v50
    %vm52 = vcmask 123904
    %v53 = vsel %vm52, %v51, 0.0
    %54 = vadd.xlane.f32.xlu0 %v53
    %v55 = vpop.xlane.xlu0 %54
    %v56 = vmul.f32 %v38, %v39
    %58 = vrot.lane.b32.xlu0 %v56, 114
    %v59 = vpop.permute.xlu0 %58
    %v61 = vsel %vm46, %v59, 0.0
    %62 = vadd.xlane.f32.xlu0 %v61
    %v63 = vpop.xlane.xlu0 %62
    %v64 = vmul.f32 %v38, %v38
    %66 = vrot.lane.b32.xlu0 %v64, 114
    %v67 = vpop.permute.xlu0 %66
    %v69 = vsel %vm46, %v67, 0.0
    %70 = vadd.xlane.f32.xlu0 %v69
    %v71 = vpop.xlane.xlu0 %70
    %73 = vrot.lane.b32.xlu0 %v39, 16
    %v74 = vpop.permute.xlu0 %73
    %v76 = vsub.f32 %v38, %v74
    %v77 = vmul.f32 %v76, %v76
    %79 = vrot.lane.b32.xlu0 %v77, 112
    %v80 = vpop.permute.xlu0 %79
    %v82 = vsel %vm52, %v80, 0.0
    %83 = vadd.xlane.f32.xlu0 %v82
    %v84 = vpop.xlane.xlu0 %83
    %v85 = vmul.f32 %v38, %v74
    %87 = vrot.lane.b32.xlu0 %v85, 98
    %v88 = vpop.permute.xlu0 %87
    %v90 = vsel %vm46, %v88, 0.0
    %91 = vadd.xlane.f32.xlu0 %v90
    %v92 = vpop.xlane.xlu0 %91
    %93 = vrot.lane.b32.xlu0 %v64, 98
    %v94 = vpop.permute.xlu0 %93
    %v96 = vsel %vm46, %v94, 0.0
    %97 = vadd.xlane.f32.xlu0 %v96
    %v98 = vpop.xlane.xlu0 %97
    %99 = vrot.lane.b32.xlu0 %v39, 32
    %v100 = vpop.permute.xlu0 %99
    %v102 = vsub.f32 %v38, %v100
    %v103 = vmul.f32 %v102, %v102
    %105 = vrot.lane.b32.xlu0 %v103, 96
    %v106 = vpop.permute.xlu0 %105
    %v108 = vsel %vm52, %v106, 0.0
    %109 = vadd.xlane.f32.xlu0 %v108
    %v110 = vpop.xlane.xlu0 %109
    %v111 = vmul.f32 %v38, %v100
    %113 = vrot.lane.b32.xlu0 %v111, 82
    %v114 = vpop.permute.xlu0 %113
    %v116 = vsel %vm46, %v114, 0.0
    %117 = vadd.xlane.f32.xlu0 %v116
    %v118 = vpop.xlane.xlu0 %117
    %119 = vrot.lane.b32.xlu0 %v64, 82
    %v120 = vpop.permute.xlu0 %119
    %v122 = vsel %vm46, %v120, 0.0
    %123 = vadd.xlane.f32.xlu0 %v122
    %v124 = vpop.xlane.xlu0 %123
    %125 = vrot.lane.b32.xlu0 %v39, 48
    %v126 = vpop.permute.xlu0 %125
    %v128 = vsub.f32 %v38, %v126
    %v129 = vmul.f32 %v128, %v128
    %131 = vrot.lane.b32.xlu0 %v129, 80
    %v132 = vpop.permute.xlu0 %131
    %v134 = vsel %vm52, %v132, 0.0
    %135 = vadd.xlane.f32.xlu0 %v134
    %v136 = vpop.xlane.xlu0 %135
    %v137 = vmul.f32 %v38, %v126
    %139 = vrot.lane.b32.xlu0 %v137, 66
    %v140 = vpop.permute.xlu0 %139
    %v142 = vsel %vm46, %v140, 0.0
    %143 = vadd.xlane.f32.xlu0 %v142
    %v144 = vpop.xlane.xlu0 %143
    %145 = vrot.lane.b32.xlu0 %v64, 66
    %v146 = vpop.permute.xlu0 %145
    %v148 = vsel %vm46, %v146, 0.0
    %149 = vadd.xlane.f32.xlu0 %v148
    %v150 = vpop.xlane.xlu0 %149
    %vm151 = vcmask 7168
    %v152 = vsel %vm151, %v55, %v84
    %vm153 = vcmask 15360
    %v154 = vsel %vm153, %v152, %v110
    %vm155 = vcmask 23552
    %v156 = vsel %vm155, %v154, %v136
    %v157 = vsel %vm151, %v63, %v92
    %v158 = vsel %vm153, %v157, %v118
    %v159 = vsel %vm155, %v158, %v144
    %v160 = vsel %vm151, %v71, %v98
    %v161 = vsel %vm153, %v160, %v124
    %v162 = vsel %vm155, %v161, %v150
    %v163 = vmul.f32 %v162, %v49
    %v164 = vrsqrt.pop %v163
    %v165 = vmul.f32 %v159, %v164
    %vm166 = vcmp.gt.f32.partialorder %v165, 0.9961947
    %vm167 = vcmp.le.f32.partialorder %v165, 1.0
    %vm168 = vmand %vm166, %vm167
    %v169 = vsel %vm168, 1, 0
    %vm170 = vcmask 25600
    %v171 = vsel %vm170, %v169, 2147483648
    %v172 = vand.u32 %v171, 65535
    %v173 = vshra.s32 %v171, 16
    %v174 = vcvt.s32.f32 %v172
    %v175 = vcvt.s32.f32 %v173
    %176 = vmax.xlane.f32.xlu0 %v175
    %v177 = vpop.xlane.xlu0 %176
    %vm178 = vcmp.eq.f32.partialorder %v175, %v177
    %v179 = vsel %vm178, %v174, -inf
    %180 = vmax.xlane.f32.xlu0 %v179
    %v181 = vpop.xlane.xlu0 %180
    %v182 = vcvt.f32.s32 %v181
    %v183 = vcvt.f32.s32 %v177
    %v184 = vshll.u32 %v183, 16
    %v185 = vadd.s32 %v184, %v182
    %vm186 = vcmp.eq.s32.totalorder %v185, 0
    %v187 = vsel %vm186, 1, 0
    %vm188 = vcmp.eq.s32.totalorder %v187, 1
    %vm189 = vmor %vm168, %vm188
    %v190 = vsel %vm189, %v156, inf
    %v191 = vsel %vm170, %v190, inf
    %192 = vmin.xlane.f32.xlu0 %v191
    %v193 = vpop.xlane.xlu0 %192
    %v194 = vlaneseq
    %v195 = vand.u32 %v194, 127
    %vm196 = vcmp.eq.f32.partialorder %v190, %v193
    %v197 = vsel %vm196, %v195, 4
    %v198 = vsel %vm170, %v197, 2147483647
    %v199 = vand.u32 %v198, 65535
    %v200 = vshra.s32 %v198, 16
    %v201 = vcvt.s32.f32 %v199
    %v202 = vcvt.s32.f32 %v200
    %203 = vmin.xlane.f32.xlu0 %v202
    %v204 = vpop.xlane.xlu0 %203
    %vm205 = vcmp.eq.f32.partialorder %v202, %v204
    %v206 = vsel %vm205, %v201, inf
    %207 = vmin.xlane.f32.xlu0 %v206
    %v208 = vpop.xlane.xlu0 %207
    %v209 = vcvt.f32.s32 %v208
    %v210 = vcvt.f32.s32 %v204
    %v211 = vshll.u32 %v210, 16
    %v212 = vadd.s32 %v211, %v209
    %vm213 = vcmp.eq.s32.totalorder %v195, %v212
    %v214 = vsel %vm170, %v40, -inf
    %215 = vmax.xlane.f32.xlu0 %v214
    %v216 = vpop.xlane.xlu0 %215
    %v217 = vsub.f32 %v40, %v216
    %v218 = vmul.f32 %v217, 1.442695
    %v219 = vpow.pop %v218
    %v220 = vsel %vm170, %v219, 0.0
    %221 = vadd.xlane.f32.xlu0 %v220
    %v222 = vpop.xlane.xlu0 %221
    %v223 = vsel %vm213, %v219, 0.0
    %v224 = vsel %vm170, %v223, 0.0
    %225 = vadd.xlane.f32.xlu0 %v224
    %v226 = vpop.xlane.xlu0 %225
    %v227 = vrcp.pop %v222
    %v228 = vmul.f32 %v226, %v227
    %v229 = vadd.f32 %v228, 1e-08
    %v230 = vlog2.pop %v229
    %v231 = vmul.f32 %v230, 0.6931472
    %v232 = vsub.f32 0.0, %v231
    %vm233 = vcmask 1024
    %234 = vst.msk [vmem:[%s3] sm:$0x3] %vm233, %v232
    // Predicated region
    $region22: #{tpu_custom_call.1} parent=1 // pred_check
      _
    $region23: #{tpu_custom_call.1} parent=1 // pred_check_branch
      %236 = sbr.rel (0) target = $region25
    $region24: #{tpu_custom_call.1} parent=1 // pred_region
      _
    $region25: #{tpu_custom_call.1} parent=1 // pred_fallthru
      _
    // Predicated region
    $region26: #{tpu_custom_call.1} parent=1 // pred_check
      _
    $region27: #{tpu_custom_call.1} parent=1 // pred_check_branch
      %238 = sbr.rel (0) target = $region29
    $region28: #{tpu_custom_call.1} parent=1 // pred_region
      _
    $region29: #{tpu_custom_call.1} parent=1 // pred_fallthru
      _
    %239 = vsyncpa [#allocation3], 1
    %240 = vsyncpa [#allocation5], 1

</llo_original>
